<compile_context>
chip_gen: v7x
topology: tpu7x:2x2x1
jax: 0.10.0
libtpu: 0.0.40
codegen_flags: <defaults>
</compile_context>

<pallas_src>
import functools

import jax
import jax.numpy as jnp
from jax.experimental import pallas as pl
from jax.experimental.pallas import tpu as pltpu


# -----------------------------------------------------------------------------
# Pallas kernel: full MLP forward for one lane-dense batch tile (feature-major).
# -----------------------------------------------------------------------------
def _pinn_mlp_kernel(x_ref, vecs_ref, w2_ref, w3_ref, b3_ref, o_ref, *,
                     use_bf16):
    # x_ref: (1, 1, TM) lane-dense tile of scalar collocation points.
    x = x_ref[0]                                              # (1, TM) f32

    # Packed per-feature vectors: column 0 = w1, 1 = b1, 2 = b2 (each (H, 1)).
    vecs = vecs_ref[...]                                      # (H, 3) f32
    w1 = vecs[:, 0:1]
    b1 = vecs[:, 1:2]
    b2 = vecs[:, 2:3]

    # Layer 1 (in_dim = 1): outer product on the VPU, tanh on the EUP.
    h = jnp.tanh(w1 * x + b1)                                 # (H, TM)

    # Layer 2: feature-major matmul on the MXU, f32 accumulate.
    # w2 is stored PyTorch-style (out, in) = (H, H):  h <- tanh(w2 @ h + b2)
    if use_bf16:
        z = jnp.dot(w2_ref[...].astype(jnp.bfloat16),
                    h.astype(jnp.bfloat16),
                    preferred_element_type=jnp.float32)
    else:
        z = jnp.dot(w2_ref[...], h, preferred_element_type=jnp.float32)
    h = jnp.tanh(z + b2)                                      # (H, TM)

    # Layer 3 (out_dim = 1, no activation): (1,H)x(H,TM) dot on the MXU.
    # w3 stored PyTorch-style (1, H); b3 is an SMEM scalar.
    out = jnp.dot(w3_ref[...], h, preferred_element_type=jnp.float32) + b3_ref[0]
    o_ref[0] = out.astype(o_ref.dtype)                        # (1, TM) store


# -----------------------------------------------------------------------------
# Tile selection: big tiles, but keep >= 2 grid steps for v7x's 2 TensorCores.
# -----------------------------------------------------------------------------
def _pick_tile_m(n, max_tile=2048, min_tile=128):
    half = (n + 1) // 2                      # target 2 grid steps
    tile = ((half + 127) // 128) * 128       # lane-dense (multiple of 128)
    return max(min_tile, min(max_tile, tile))


# -----------------------------------------------------------------------------
# Wrapper: cdiv grid over the batch, lane-dense x/output slabs, resident weights.
# -----------------------------------------------------------------------------
@functools.partial(jax.jit, static_argnames=("tile_m", "use_bf16"))
def pinn_forward(x, params, *, tile_m=None, use_bf16=False):
    """Forward pass of GrossPitaevskiiPINN.network (layers = [1, H, H, 1]).

    x       : (N, 1) float32 collocation points.
    params  : dict with PyTorch-oriented weights:
              w1 (H, 1), b1 (H, 1), w2 (H, H), b2 (H, 1), w3 (1, H), b3 (1,).
    returns : (N, 1) float32 perturbation prediction.
    """
    n, in_dim = x.shape
    assert in_dim == 1
    h = params["w1"].shape[0]

    if tile_m is None:
        tile_m = _pick_tile_m(n)
    grid_m = pl.cdiv(n, tile_m)
    n_pad = grid_m * tile_m

    # Lane-dense layout: (grid_m, 1, tile_m) so each block is a contiguous
    # (1, 1, tile_m) slab (last dim = full array dim, multiple of 128).
    x_flat = x.reshape(n)
    if n_pad != n:
        x_flat = jnp.pad(x_flat, (0, n_pad - n))
    x3 = x_flat.reshape(grid_m, 1, tile_m)

    # Pack the three (H, 1) vectors into one resident (H, 3) tile: one DMA,
    # one lane-padded VMEM tile instead of three.
    vecs = jnp.concatenate(
        [params["w1"], params["b1"], params["b2"]], axis=1)   # (H, 3)
    w2 = params["w2"]                                         # (H, H)
    w3 = params["w3"]                                         # (1, H)
    b3 = params["b3"].reshape(1)                              # (1,) -> SMEM

    def resident(shape):
        # Constant block index -> stays resident in VMEM across the whole grid
        # (no per-step DMA).
        return pl.BlockSpec(shape, lambda i: (0, 0))

    cost = pl.CostEstimate(
        flops=int(n_pad * (2 * h * h + 4 * h)),
        transcendentals=int(2 * h * n_pad),
        bytes_accessed=int(4 * (2 * n_pad + h * h + 4 * h + 1)),
    )

    out = pl.pallas_call(
        functools.partial(_pinn_mlp_kernel, use_bf16=use_bf16),
        out_shape=jax.ShapeDtypeStruct((grid_m, 1, tile_m), jnp.float32),
        grid_spec=pltpu.PrefetchScalarGridSpec(
            num_scalar_prefetch=0,
            grid=(grid_m,),
            in_specs=[
                pl.BlockSpec((1, 1, tile_m), lambda i: (i, 0, 0)),  # x tile
                resident((h, 3)),                                   # w1|b1|b2
                resident((h, h)),                                   # w2
                resident((1, h)),                                   # w3
                pl.BlockSpec(memory_space=pltpu.MemorySpace.SMEM),  # b3 scalar
            ],
            out_specs=pl.BlockSpec((1, 1, tile_m), lambda i: (i, 0, 0)),
        ),
        compiler_params=pltpu.CompilerParams(
            dimension_semantics=("parallel",)),
        cost_estimate=cost,
    )(x3, vecs, w2, w3, b3)

    # Drop padded rows; restore (N, 1).
    return out.reshape(n_pad, 1)[:n]


# -----------------------------------------------------------------------------
# Deterministic parameter init (mimics nn.Linear default uniform init),
# stored in the PyTorch (out, in) layout the kernel expects.
# -----------------------------------------------------------------------------
def init_params(key, layers=(1, 128, 128, 1)):
    assert len(layers) == 4, "this kernel implements the 3-linear-layer PINN"
    k1, k2, k3, k4, k5, k6 = jax.random.split(key, 6)

    def uniform(k, shape, fan_in):
        bound = 1.0 / jnp.sqrt(jnp.float32(fan_in))
        return jax.random.uniform(k, shape, jnp.float32, -bound, bound)

    d0, d1, d2, d3 = layers
    return {
        "w1": uniform(k1, (d1, d0), d0),    # (H, 1)
        "b1": uniform(k2, (d1, 1), d0),     # (H, 1)
        "w2": uniform(k3, (d2, d1), d1),    # (H, H) = (out, in)
        "b2": uniform(k4, (d2, 1), d1),     # (H, 1)
        "w3": uniform(k5, (d3, d2), d2),    # (1, H) = PyTorch (out, in)
        "b3": uniform(k6, (d3,), d2),       # (1,)
    }


def pinn_forward_ref(x, params):
    """Pure-JAX reference of the same forward (for correctness check)."""
    h = jnp.tanh(x @ params["w1"].T + params["b1"].T)
    h = jnp.tanh(h @ params["w2"].T + params["b2"].T)
    return h @ params["w3"].T + params["b3"][None, :]


if __name__ == "__main__":
    key = jax.random.PRNGKey(0)
    kx, kp = jax.random.split(key)

    layers = (1, 128, 128, 1)   # GrossPitaevskiiPINN(layers=[1, 128, 128, 1])
    n = 1000                    # collocation points: auto-tile -> tile_m=512,
                                # grid_m=2 (feeds both v7x TCs), 24 pad rows.

    x = jax.random.uniform(kx, (n, 1), jnp.float32, -5.0, 5.0)
    params = init_params(kp, layers)

    out = pinn_forward(x, params, use_bf16=False)
    out = jax.block_until_ready(out)

    ref = pinn_forward_ref(x, params)
    assert out.shape == (n, 1)
    assert jnp.allclose(out, ref, atol=1e-4, rtol=1e-4)

    print("KERNEL_OK")
</pallas_src>

<mosaic_0001>
module attributes {stable_mosaic.version = 11 : i64} {
  func.func @_pinn_mlp_kernel(%arg0: i32, %arg1: memref<1x1x512xf32, #tpu.memory_space<vmem>>, %arg2: memref<128x3xf32, #tpu.memory_space<vmem>>, %arg3: memref<128x128xf32, #tpu.memory_space<vmem>>, %arg4: memref<1x128xf32, #tpu.memory_space<vmem>>, %arg5: memref<1xf32, #tpu.memory_space<smem>>, %arg6: memref<1x1x512xf32, #tpu.memory_space<vmem>>) attributes {dimension_semantics = [#tpu.dimension_semantics<parallel>], iteration_bounds = array<i64: 2>, scalar_prefetch = 0 : i64, scratch_operands = 0 : i64, tpu.core_type = #tpu.core_type<tc>, window_params = [{transform_indices = @transform_0, window_bounds = array<i64: 1, 1, 512>}, {pipeline_mode = #tpu.pipeline_mode<synchronous>, transform_indices = @transform_1, window_bounds = array<i64: 128, 3>}, {pipeline_mode = #tpu.pipeline_mode<synchronous>, transform_indices = @transform_2, window_bounds = array<i64: 128, 128>}, {pipeline_mode = #tpu.pipeline_mode<synchronous>, transform_indices = @transform_3, window_bounds = array<i64: 1, 128>}, {transform_indices = @transform_4, window_bounds = array<i64: 1>}, {transform_indices = @transform_5, window_bounds = array<i64: 1, 1, 512>}]} {
    %c0 = arith.constant 0 : index
    %c0_0 = arith.constant 0 : index
    %c0_1 = arith.constant 0 : index
    %0 = vector.load %arg1[%c0, %c0_0, %c0_1] : memref<1x1x512xf32, #tpu.memory_space<vmem>>, vector<1x1x512xf32>
    %1 = vector.shape_cast %0 : vector<1x1x512xf32> to vector<1x512xf32>
    %c0_2 = arith.constant 0 : index
    %c0_3 = arith.constant 0 : index
    %2 = vector.load %arg2[%c0_2, %c0_3] : memref<128x3xf32, #tpu.memory_space<vmem>>, vector<128x3xf32>
    %3 = vector.extract_strided_slice %2 {offsets = [0, 0], sizes = [128, 1], strides = [1, 1]} : vector<128x3xf32> to vector<128x1xf32>
    %4 = vector.extract_strided_slice %2 {offsets = [0, 1], sizes = [128, 1], strides = [1, 1]} : vector<128x3xf32> to vector<128x1xf32>
    %5 = vector.extract_strided_slice %2 {offsets = [0, 2], sizes = [128, 1], strides = [1, 1]} : vector<128x3xf32> to vector<128x1xf32>
    %6 = vector.broadcast %3 : vector<128x1xf32> to vector<128x512xf32>
    %7 = vector.broadcast %1 : vector<1x512xf32> to vector<128x512xf32>
    %8 = arith.mulf %6, %7 : vector<128x512xf32>
    %9 = vector.broadcast %4 : vector<128x1xf32> to vector<128x512xf32>
    %10 = arith.addf %8, %9 : vector<128x512xf32>
    %11 = math.tanh %10 : vector<128x512xf32>
    %c0_4 = arith.constant 0 : index
    %c0_5 = arith.constant 0 : index
    %12 = vector.load %arg3[%c0_4, %c0_5] : memref<128x128xf32, #tpu.memory_space<vmem>>, vector<128x128xf32>
    %cst = arith.constant dense<0.000000e+00> : vector<128x512xf32>
    %13 = tpu.matmul %12, %11, %cst {dimension_numbers = #tpu.dot_dimension_numbers<[1], [0], [0], [1], [0, 0, 1, 1], [], []>} : vector<128x128xf32>, vector<128x512xf32>, vector<128x512xf32> -> vector<128x512xf32>
    %14 = vector.broadcast %5 : vector<128x1xf32> to vector<128x512xf32>
    %15 = arith.addf %13, %14 : vector<128x512xf32>
    %16 = math.tanh %15 : vector<128x512xf32>
    %c0_6 = arith.constant 0 : index
    %c0_7 = arith.constant 0 : index
    %17 = vector.load %arg4[%c0_6, %c0_7] : memref<1x128xf32, #tpu.memory_space<vmem>>, vector<1x128xf32>
    %cst_8 = arith.constant dense<0.000000e+00> : vector<1x512xf32>
    %18 = tpu.matmul %17, %16, %cst_8 {dimension_numbers = #tpu.dot_dimension_numbers<[1], [0], [0], [1], [0, 0, 1, 1], [], []>} : vector<1x128xf32>, vector<128x512xf32>, vector<1x512xf32> -> vector<1x512xf32>
    %c0_9 = arith.constant 0 : index
    %19 = memref.load %arg5[%c0_9] : memref<1xf32, #tpu.memory_space<smem>>
    %20 = vector.broadcast %19 : f32 to vector<1x512xf32>
    %21 = arith.addf %18, %20 : vector<1x512xf32>
    %c0_10 = arith.constant 0 : index
    %c0_11 = arith.constant 0 : index
    %c0_12 = arith.constant 0 : index
    %22 = vector.load %arg6[%c0_10, %c0_11, %c0_12] : memref<1x1x512xf32, #tpu.memory_space<vmem>>, vector<1x1x512xf32>
    %23 = vector.shape_cast %22 : vector<1x1x512xf32> to vector<1x512xf32>
    %24 = vector.shape_cast %21 : vector<1x512xf32> to vector<1x1x512xf32>
    tpu.vector_store %arg6[%c0_10, %c0_11, %c0_12], %24 {strides = array<i32>} : memref<1x1x512xf32, #tpu.memory_space<vmem>>, vector<1x1x512xf32>,
    return
  }
  func.func @transform_0(%arg0: i32) -> (i32, i32, i32) {
    %c0_i32 = arith.constant 0 : i32
    %c0_i32_0 = arith.constant 0 : i32
    %c0_i32_1 = arith.constant 0 : i32
    return %arg0, %c0_i32, %c0_i32_0 : i32, i32, i32
  }
  func.func @transform_1(%arg0: i32) -> (i32, i32) {
    %c0_i32 = arith.constant 0 : i32
    %c0_i32_0 = arith.constant 0 : i32
    %c0_i32_1 = arith.constant 0 : i32
    return %c0_i32, %c0_i32_0 : i32, i32
  }
  func.func @transform_2(%arg0: i32) -> (i32, i32) {
    %c0_i32 = arith.constant 0 : i32
    %c0_i32_0 = arith.constant 0 : i32
    %c0_i32_1 = arith.constant 0 : i32
    return %c0_i32, %c0_i32_0 : i32, i32
  }
  func.func @transform_3(%arg0: i32) -> (i32, i32) {
    %c0_i32 = arith.constant 0 : i32
    %c0_i32_0 = arith.constant 0 : i32
    %c0_i32_1 = arith.constant 0 : i32
    return %c0_i32, %c0_i32_0 : i32, i32
  }
  func.func @transform_4(%arg0: i32) -> i32 {
    %c0_i32 = arith.constant 0 : i32
    %c0_i32_0 = arith.constant 0 : i32
    return %c0_i32 : i32
  }
  func.func @transform_5(%arg0: i32) -> (i32, i32, i32) {
    %c0_i32 = arith.constant 0 : i32
    %c0_i32_0 = arith.constant 0 : i32
    %c0_i32_1 = arith.constant 0 : i32
    return %arg0, %c0_i32, %c0_i32_0 : i32, i32, i32
  }
}

</mosaic_0001>

<llo_original>
// kernel: pinn_forward.1
$region0: #{pinn_forward.1}
  #allocation0 [shape = 'u32[]', space=smem, size = 0x4, offset = 0x4, fixed_abs, tag = 'smem constant byte address 0x4 - core index']
  #allocation1 [shape = 'u32[144,128]{1,0:T(1,128)}', space=vmem, size = 0x12000, scoped, tag = 'internal scratch']
  #allocation2 [shape = 'f32[1]{0:T(128)S(6)}', space=smem, size = 0x200, scoped, tag = 'scoped memory for pinn_forward.1']
  %s0 = inlined_call_operand.vmem [shape: f32[2,1,512], index: 0, kind: input, shape index: {}]
  %s1 = inlined_call_operand.vmem [shape: f32[128,3], index: 1, kind: input, shape index: {}]
  %s2 = inlined_call_operand.vmem [shape: f32[128,128], index: 2, kind: input, shape index: {}]
  %s3 = inlined_call_operand.vmem [shape: f32[1,128], index: 3, kind: input, shape index: {}]
  %s4 = inlined_call_operand.<no memory space> [shape: f32[1], index: 4, kind: input, shape index: {}]
  %s5 = inlined_call_operand.hbm [shape: f32[2,1,512], index: 5, kind: output, shape index: {}]
  %s6 = sld [smem:[#allocation0]]
  $region53: #{pinn_forward.1} parent=0
    _
  %s8 = ssub.s32 1, %s6
  %s9 = scalar_select 0, %s8, %s6
  %10 = sst [smem:[#allocation2]] %s4
  $region1: #{pinn_forward.1} parent=0
    #allocation3 [shape = 'u8[4096]{0}', space=vmem, size = 0x1000, scoped, tag = 'output window, operand 0']
    #allocation4 [shape = 's32[2]{0}', space=sflag, size = 0x8, scoped, tag = 'scoped memory for pinn_forward.1']
    %11 = vsyncpa [#allocation4], 0
    %s12 = scalar_lea.sflag [#allocation4], 1
    %13 = vsyncpa %s12, 0
    loop: start=0, step=1, limit=4
    $region2: #{pinn_forward.1} parent=1 // loop_pre_header
      _
    $region3: #{pinn_forward.1} parent=1 // loop_header
      %s15 = sphi 0, %s19
      %p16 = scmp.ge.s32.totalorder %s15, 4
      %s25 = sphi 0, %s27
      %s28 = sphi 0, %s25
      %s29 = sphi 0, %s28
      %s45 = sphi 0, %s29
      %s49 = sphi 0, %s49
      %s51 = sphi 0, %s49
      %s52 = sphi 0, %s51
      %s66 = sphi 0, %s52
      %s70 = sphi 0, %s70
      %s72 = sphi 0, %s70
      %s73 = sphi 0, %s72
      %s87 = sphi 0, %s73
      %s91 = sphi 0, %s91
      %s93 = sphi 0, %s91
      %s94 = sphi 0, %s93
      %s108 = sphi 0, %s94
      %s112 = sphi 0, %s112
      %s114 = sphi 0, %s112
      %s115 = sphi 0, %s114
      %s129 = sphi 0, %s115
      %s135 = sphi 0, %s137
      %s138 = sphi 0, %s135
      %s139 = sphi 0, %s138
      %s155 = sphi 0, %s139
    $region4: #{pinn_forward.1} parent=1 // loop_header_branch
      %18 = sbr.rel (%p16) target = $region8
    $region5: #{pinn_forward.1} parent=1 // loop_body
      %s20 = ssub.s32 %s15, 1
      %s21 = ssub.s32 %s15, 2
      %s22 = sadd.s32 %s15, 1
      %s23 = ssub.s32 %s15, %s22
      %p24 = scmp.eq.s32.totalorder %s23, 0
      %s26 = sadd.s32 %s25, 1
      %s27 = scalar_select %p24, %s25, %s26
      %p30 = pneg %p24
      %p31 = scmp.eq.s32.totalorder %s15, 1
      %p32 = por %p30, %p31
      %p33 = scmp.ne.s32.totalorder %s25, %s28
      %p34 = scmp.eq.s32.totalorder %s15, 0
      %p35 = por %p33, %p34
      %p36 = scmp.ne.s32.totalorder %s25, %s28
      %p37 = scmp.eq.s32.totalorder %s20, 1
      %p38 = por %p36, %p37
      %p39 = scmp.ne.s32.totalorder %s28, %s29
      %p40 = scmp.eq.s32.totalorder %s20, 0
      %p41 = por %p39, %p40
      %p42 = scmp.ne.s32.totalorder %s28, %s29
      %p43 = scmp.eq.s32.totalorder %s21, 1
      %p44 = por %p42, %p43
      %p46 = scmp.ne.s32.totalorder %s29, %s45
      %p47 = scmp.eq.s32.totalorder %s21, 0
      %p48 = por %p46, %p47
      %s50 = sadd.s32 %s49, 1
      %p53 = scmp.eq.s32.totalorder %s15, 1
      %p54 = scmp.ne.s32.totalorder %s49, %s51
      %p55 = scmp.eq.s32.totalorder %s15, 0
      %p56 = por %p54, %p55
      %p57 = scmp.ne.s32.totalorder %s49, %s51
      %p58 = scmp.eq.s32.totalorder %s20, 1
      %p59 = por %p57, %p58
      %p60 = scmp.ne.s32.totalorder %s51, %s52
      %p61 = scmp.eq.s32.totalorder %s20, 0
      %p62 = por %p60, %p61
      %p63 = scmp.ne.s32.totalorder %s51, %s52
      %p64 = scmp.eq.s32.totalorder %s21, 1
      %p65 = por %p63, %p64
      %p67 = scmp.ne.s32.totalorder %s52, %s66
      %p68 = scmp.eq.s32.totalorder %s21, 0
      %p69 = por %p67, %p68
      %s71 = sadd.s32 %s70, 1
      %p74 = scmp.eq.s32.totalorder %s15, 1
      %p75 = scmp.ne.s32.totalorder %s70, %s72
      %p76 = scmp.eq.s32.totalorder %s15, 0
      %p77 = por %p75, %p76
      %p78 = scmp.ne.s32.totalorder %s70, %s72
      %p79 = scmp.eq.s32.totalorder %s20, 1
      %p80 = por %p78, %p79
      %p81 = scmp.ne.s32.totalorder %s72, %s73
      %p82 = scmp.eq.s32.totalorder %s20, 0
      %p83 = por %p81, %p82
      %p84 = scmp.ne.s32.totalorder %s72, %s73
      %p85 = scmp.eq.s32.totalorder %s21, 1
      %p86 = por %p84, %p85
      %p88 = scmp.ne.s32.totalorder %s73, %s87
      %p89 = scmp.eq.s32.totalorder %s21, 0
      %p90 = por %p88, %p89
      %s92 = sadd.s32 %s91, 1
      %p95 = scmp.eq.s32.totalorder %s15, 1
      %p96 = scmp.ne.s32.totalorder %s91, %s93
      %p97 = scmp.eq.s32.totalorder %s15, 0
      %p98 = por %p96, %p97
      %p99 = scmp.ne.s32.totalorder %s91, %s93
      %p100 = scmp.eq.s32.totalorder %s20, 1
      %p101 = por %p99, %p100
      %p102 = scmp.ne.s32.totalorder %s93, %s94
      %p103 = scmp.eq.s32.totalorder %s20, 0
      %p104 = por %p102, %p103
      %p105 = scmp.ne.s32.totalorder %s93, %s94
      %p106 = scmp.eq.s32.totalorder %s21, 1
      %p107 = por %p105, %p106
      %p109 = scmp.ne.s32.totalorder %s94, %s108
      %p110 = scmp.eq.s32.totalorder %s21, 0
      %p111 = por %p109, %p110
      %s113 = sadd.s32 %s112, 1
      %p116 = scmp.eq.s32.totalorder %s15, 1
      %p117 = scmp.ne.s32.totalorder %s112, %s114
      %p118 = scmp.eq.s32.totalorder %s15, 0
      %p119 = por %p117, %p118
      %p120 = scmp.ne.s32.totalorder %s112, %s114
      %p121 = scmp.eq.s32.totalorder %s20, 1
      %p122 = por %p120, %p121
      %p123 = scmp.ne.s32.totalorder %s114, %s115
      %p124 = scmp.eq.s32.totalorder %s20, 0
      %p125 = por %p123, %p124
      %p126 = scmp.ne.s32.totalorder %s114, %s115
      %p127 = scmp.eq.s32.totalorder %s21, 1
      %p128 = por %p126, %p127
      %p130 = scmp.ne.s32.totalorder %s115, %s129
      %p131 = scmp.eq.s32.totalorder %s21, 0
      %p132 = por %p130, %p131
      %s133 = ssub.s32 %s15, %s22
      %p134 = scmp.eq.s32.totalorder %s133, 0
      %s136 = sadd.s32 %s135, 1
      %s137 = scalar_select %p134, %s135, %s136
      %p140 = pneg %p134
      %p141 = scmp.eq.s32.totalorder %s15, 1
      %p142 = por %p140, %p141
      %p143 = scmp.ne.s32.totalorder %s135, %s138
      %p144 = scmp.eq.s32.totalorder %s15, 0
      %p145 = por %p143, %p144
      %p146 = scmp.ne.s32.totalorder %s135, %s138
      %p147 = scmp.eq.s32.totalorder %s20, 1
      %p148 = por %p146, %p147
      %p149 = scmp.ne.s32.totalorder %s138, %s139
      %p150 = scmp.eq.s32.totalorder %s20, 0
      %p151 = por %p149, %p150
      %p152 = scmp.ne.s32.totalorder %s138, %s139
      %p153 = scmp.eq.s32.totalorder %s21, 1
      %p154 = por %p152, %p153
      %p156 = scmp.ne.s32.totalorder %s139, %s155
      %p157 = scmp.eq.s32.totalorder %s21, 0
      %p158 = por %p156, %p157
      %p159 = scmp.le.s32.totalorder 1, %s15
      %p160 = scmp.lt.s32.totalorder %s15, 3
      %p161 = pnand %p159, %p160
      %p162 = pneg %p161
      // Predicated region
      $region9: #{pinn_forward.1} parent=5 // pred_check
        _
      $region10: #{pinn_forward.1} parent=5 // pred_check_branch
        %164 = sbr.rel (%p161) target = $region12
      $region11: #{pinn_forward.1} parent=5 // pred_region
        %s165 = ssub.s32 %s15, 1
        // Predicated region
        $region13: #{pinn_forward.1} parent=11 // pred_check
          %p166 = pneg %p62
        $region14: #{pinn_forward.1} parent=11 // pred_check_branch
          %168 = sbr.rel (%p166) target = $region16
        $region15: #{pinn_forward.1} parent=11 // pred_region
          _
        $region16: #{pinn_forward.1} parent=11 // pred_fallthru
          _
        // Predicated region
        $region17: #{pinn_forward.1} parent=11 // pred_check
          %p169 = pneg %p83
        $region18: #{pinn_forward.1} parent=11 // pred_check_branch
          %171 = sbr.rel (%p169) target = $region20
        $region19: #{pinn_forward.1} parent=11 // pred_region
          _
        $region20: #{pinn_forward.1} parent=11 // pred_fallthru
          _
        // Predicated region
        $region21: #{pinn_forward.1} parent=11 // pred_check
          %p172 = pneg %p104
        $region22: #{pinn_forward.1} parent=11 // pred_check_branch
          %174 = sbr.rel (%p172) target = $region24
        $region23: #{pinn_forward.1} parent=11 // pred_region
          _
        $region24: #{pinn_forward.1} parent=11 // pred_fallthru
          _
        // Predicated region
        $region25: #{pinn_forward.1} parent=11 // pred_check
          %p175 = pneg %p125
        $region26: #{pinn_forward.1} parent=11 // pred_check_branch
          %177 = sbr.rel (%p175) target = $region28
        $region27: #{pinn_forward.1} parent=11 // pred_region
          _
        $region28: #{pinn_forward.1} parent=11 // pred_fallthru
          _
      $region12: #{pinn_forward.1} parent=5 // pred_fallthru
        _
      %p178 = scmp.lt.s32.totalorder %s15, 2
      // Predicated region
      $region29: #{pinn_forward.1} parent=5 // pred_check
        %p179 = pneg %p178
      $region30: #{pinn_forward.1} parent=5 // pred_check_branch
        %181 = sbr.rel (%p179) target = $region32
      $region31: #{pinn_forward.1} parent=5 // pred_region
        // Predicated region
        $region33: #{pinn_forward.1} parent=31 // pred_check
          %p182 = pneg %p35
        $region34: #{pinn_forward.1} parent=31 // pred_check_branch
          %184 = sbr.rel (%p182) target = $region36
        $region35: #{pinn_forward.1} parent=31 // pred_region
          %p185 = scmp.lt.s32.totalorder %s15, 1
          %s186 = scalar_select %p185, %s15, 1
          %s187 = smul.addr %s186, 4
          %s188 = scalar_lea.vmem %s0, %s187
        $region36: #{pinn_forward.1} parent=31 // pred_fallthru
          _
      $region32: #{pinn_forward.1} parent=5 // pred_fallthru
        _
      %p189 = scmp.le.s32.totalorder 1, %s15
      %p190 = scmp.lt.s32.totalorder %s15, 3
      %p191 = pnand %p189, %p190
      %p192 = pneg %p191
      // Predicated region
      $region37: #{pinn_forward.1} parent=5 // pred_check
        _
      $region38: #{pinn_forward.1} parent=5 // pred_check_branch
        %194 = sbr.rel (%p191) target = $region40
      $region39: #{pinn_forward.1} parent=5 // pred_region
        %s195 = ssub.s32 %s15, 1
        %p196 = scmp.lt.s32.totalorder %s20, 1
        %s197 = scalar_select %p196, %s20, 1
        %s198 = smul.addr %s197, 4
        %s199 = scalar_lea.vmem %s0, %s198
        %p200 = pneg %p41
        %p201 = pneg %p38
        %p202 = pneg %p62
        %p203 = pneg %p59
        %p204 = pneg %p83
        %p205 = pneg %p80
        %p206 = pneg %p104
        %p207 = pneg %p101
        %p208 = pneg %p125
        %p209 = pneg %p122
        %p210 = pneg %p151
        %p211 = pneg %p148
        %s212 = sand.u32 %s138, 1
        %s213 = scalar_lea.sflag [#allocation4], %s212
        %s214 = sand.u32 %s138, 1
        %s215 = smul.addr %s214, 4
        %s216 = scalar_lea.vmem [#allocation3], %s215
        %p217 = scmp.lt.s32.totalorder %s20, 1
        %s218 = scalar_select %p217, %s20, 1
        %s219 = smul.addr %s218, 4
        %s220 = scalar_lea.vmem %s0, %s219
        %v221 = vld [vmem:[%s220] sm:$0xf]
        %v222 = vld [vmem:[%s1] sm:$0xff]
        %v223 = vld [vmem:[%s1 + $0x8] sm:$0xff]
        %v224 = vld [vmem:[%s1 + $0x10] sm:$0xff]
        %v225 = vld [vmem:[%s1 + $0x18] sm:$0xff]
        %v226 = vld [vmem:[%s1 + $0x20] sm:$0xff]
        %v227 = vld [vmem:[%s1 + $0x28] sm:$0xff]
        %v228 = vld [vmem:[%s1 + $0x30] sm:$0xff]
        %v229 = vld [vmem:[%s1 + $0x38] sm:$0xff]
        %v230 = vld [vmem:[%s1 + $0x40] sm:$0xff]
        %v231 = vld [vmem:[%s1 + $0x48] sm:$0xff]
        %v232 = vld [vmem:[%s1 + $0x50] sm:$0xff]
        %v233 = vld [vmem:[%s1 + $0x58] sm:$0xff]
        %v234 = vld [vmem:[%s1 + $0x60] sm:$0xff]
        %v235 = vld [vmem:[%s1 + $0x68] sm:$0xff]
        %v236 = vld [vmem:[%s1 + $0x70] sm:$0xff]
        %v237 = vld [vmem:[%s1 + $0x78] sm:$0xff]
        %239 = vset.pattern.permute.xlu0 0
        %240 = vperm.xlu0 %239, %v222
        %v241 = vpop.permute.xlu0 %240
        %244 = vset.pattern.permute.xlu0 0
        %245 = vperm.xlu0 %244, %v223
        %v246 = vpop.permute.xlu0 %245
        %249 = vset.pattern.permute.xlu0 0
        %250 = vperm.xlu0 %249, %v224
        %v251 = vpop.permute.xlu0 %250
        %254 = vset.pattern.permute.xlu0 0
        %255 = vperm.xlu0 %254, %v225
        %v256 = vpop.permute.xlu0 %255
        %259 = vset.pattern.permute.xlu0 0
        %260 = vperm.xlu0 %259, %v226
        %v261 = vpop.permute.xlu0 %260
        %264 = vset.pattern.permute.xlu0 0
        %265 = vperm.xlu0 %264, %v227
        %v266 = vpop.permute.xlu0 %265
        %269 = vset.pattern.permute.xlu0 0
        %270 = vperm.xlu0 %269, %v228
        %v271 = vpop.permute.xlu0 %270
        %274 = vset.pattern.permute.xlu0 0
        %275 = vperm.xlu0 %274, %v229
        %v276 = vpop.permute.xlu0 %275
        %279 = vset.pattern.permute.xlu0 0
        %280 = vperm.xlu0 %279, %v230
        %v281 = vpop.permute.xlu0 %280
        %284 = vset.pattern.permute.xlu0 0
        %285 = vperm.xlu0 %284, %v231
        %v286 = vpop.permute.xlu0 %285
        %289 = vset.pattern.permute.xlu0 0
        %290 = vperm.xlu0 %289, %v232
        %v291 = vpop.permute.xlu0 %290
        %294 = vset.pattern.permute.xlu0 0
        %295 = vperm.xlu0 %294, %v233
        %v296 = vpop.permute.xlu0 %295
        %299 = vset.pattern.permute.xlu0 0
        %300 = vperm.xlu0 %299, %v234
        %v301 = vpop.permute.xlu0 %300
        %304 = vset.pattern.permute.xlu0 0
        %305 = vperm.xlu0 %304, %v235
        %v306 = vpop.permute.xlu0 %305
        %309 = vset.pattern.permute.xlu0 0
        %310 = vperm.xlu0 %309, %v236
        %v311 = vpop.permute.xlu0 %310
        %314 = vset.pattern.permute.xlu0 0
        %315 = vperm.xlu0 %314, %v237
        %v316 = vpop.permute.xlu0 %315
        %v319 = vlaneseq
        %v320 = vshrl.u32 %v319, 7
        %v321 = vsub.s32 0, %v320
        %v322 = vrot.slane %v221, %v321
        %v323 = vlaneseq
        %v324 = vshrl.u32 %v323, 7
        %v325 = vsub.s32 1, %v324
        %v326 = vrot.slane %v221, %v325
        %v327 = vlaneseq
        %v328 = vshrl.u32 %v327, 7
        %v329 = vsub.s32 2, %v328
        %v330 = vrot.slane %v221, %v329
        %v331 = vlaneseq
        %v332 = vshrl.u32 %v331, 7
        %v333 = vsub.s32 3, %v332
        %v334 = vrot.slane %v221, %v333
        %v339 = vmul.f32 %v241, %v322
        %v340 = vmul.f32 %v241, %v326
        %v341 = vmul.f32 %v241, %v330
        %v342 = vmul.f32 %v241, %v334
        %v343 = vmul.f32 %v246, %v322
        %v344 = vmul.f32 %v246, %v326
        %v345 = vmul.f32 %v246, %v330
        %v346 = vmul.f32 %v246, %v334
        %v347 = vmul.f32 %v251, %v322
        %v348 = vmul.f32 %v251, %v326
        %v349 = vmul.f32 %v251, %v330
        %v350 = vmul.f32 %v251, %v334
        %v351 = vmul.f32 %v256, %v322
        %v352 = vmul.f32 %v256, %v326
        %v353 = vmul.f32 %v256, %v330
        %v354 = vmul.f32 %v256, %v334
        %v355 = vmul.f32 %v261, %v322
        %v356 = vmul.f32 %v261, %v326
        %v357 = vmul.f32 %v261, %v330
        %v358 = vmul.f32 %v261, %v334
        %v359 = vmul.f32 %v266, %v322
        %v360 = vmul.f32 %v266, %v326
        %v361 = vmul.f32 %v266, %v330
        %v362 = vmul.f32 %v266, %v334
        %v363 = vmul.f32 %v271, %v322
        %v364 = vmul.f32 %v271, %v326
        %v365 = vmul.f32 %v271, %v330
        %v366 = vmul.f32 %v271, %v334
        %v367 = vmul.f32 %v276, %v322
        %v368 = vmul.f32 %v276, %v326
        %v369 = vmul.f32 %v276, %v330
        %v370 = vmul.f32 %v276, %v334
        %v371 = vmul.f32 %v281, %v322
        %v372 = vmul.f32 %v281, %v326
        %v373 = vmul.f32 %v281, %v330
        %v374 = vmul.f32 %v281, %v334
        %v375 = vmul.f32 %v286, %v322
        %v376 = vmul.f32 %v286, %v326
        %v377 = vmul.f32 %v286, %v330
        %v378 = vmul.f32 %v286, %v334
        %v379 = vmul.f32 %v291, %v322
        %v380 = vmul.f32 %v291, %v326
        %v381 = vmul.f32 %v291, %v330
        %v382 = vmul.f32 %v291, %v334
        %v383 = vmul.f32 %v296, %v322
        %v384 = vmul.f32 %v296, %v326
        %v385 = vmul.f32 %v296, %v330
        %v386 = vmul.f32 %v296, %v334
        %v387 = vmul.f32 %v301, %v322
        %v388 = vmul.f32 %v301, %v326
        %v389 = vmul.f32 %v301, %v330
        %v390 = vmul.f32 %v301, %v334
        %v391 = vmul.f32 %v306, %v322
        %v392 = vmul.f32 %v306, %v326
        %v393 = vmul.f32 %v306, %v330
        %v394 = vmul.f32 %v306, %v334
        %v395 = vmul.f32 %v311, %v322
        %v396 = vmul.f32 %v311, %v326
        %v397 = vmul.f32 %v311, %v330
        %v398 = vmul.f32 %v311, %v334
        %v399 = vmul.f32 %v316, %v322
        %v400 = vmul.f32 %v316, %v326
        %v401 = vmul.f32 %v316, %v330
        %v402 = vmul.f32 %v316, %v334
        %403 = vset.pattern.permute.xlu0 1
        %404 = vperm.xlu0 %403, %v222
        %v405 = vpop.permute.xlu0 %404
        %407 = vset.pattern.permute.xlu0 1
        %408 = vperm.xlu0 %407, %v223
        %v409 = vpop.permute.xlu0 %408
        %411 = vset.pattern.permute.xlu0 1
        %412 = vperm.xlu0 %411, %v224
        %v413 = vpop.permute.xlu0 %412
        %415 = vset.pattern.permute.xlu0 1
        %416 = vperm.xlu0 %415, %v225
        %v417 = vpop.permute.xlu0 %416
        %419 = vset.pattern.permute.xlu0 1
        %420 = vperm.xlu0 %419, %v226
        %v421 = vpop.permute.xlu0 %420
        %423 = vset.pattern.permute.xlu0 1
        %424 = vperm.xlu0 %423, %v227
        %v425 = vpop.permute.xlu0 %424
        %427 = vset.pattern.permute.xlu0 1
        %428 = vperm.xlu0 %427, %v228
        %v429 = vpop.permute.xlu0 %428
        %431 = vset.pattern.permute.xlu0 1
        %432 = vperm.xlu0 %431, %v229
        %v433 = vpop.permute.xlu0 %432
        %435 = vset.pattern.permute.xlu0 1
        %436 = vperm.xlu0 %435, %v230
        %v437 = vpop.permute.xlu0 %436
        %439 = vset.pattern.permute.xlu0 1
        %440 = vperm.xlu0 %439, %v231
        %v441 = vpop.permute.xlu0 %440
        %443 = vset.pattern.permute.xlu0 1
        %444 = vperm.xlu0 %443, %v232
        %v445 = vpop.permute.xlu0 %444
        %447 = vset.pattern.permute.xlu0 1
        %448 = vperm.xlu0 %447, %v233
        %v449 = vpop.permute.xlu0 %448
        %451 = vset.pattern.permute.xlu0 1
        %452 = vperm.xlu0 %451, %v234
        %v453 = vpop.permute.xlu0 %452
        %455 = vset.pattern.permute.xlu0 1
        %456 = vperm.xlu0 %455, %v235
        %v457 = vpop.permute.xlu0 %456
        %459 = vset.pattern.permute.xlu0 1
        %460 = vperm.xlu0 %459, %v236
        %v461 = vpop.permute.xlu0 %460
        %463 = vset.pattern.permute.xlu0 1
        %464 = vperm.xlu0 %463, %v237
        %v465 = vpop.permute.xlu0 %464
        %v467 = vadd.f32 %v339, %v405
        %v468 = vadd.f32 %v340, %v405
        %v469 = vadd.f32 %v341, %v405
        %v470 = vadd.f32 %v342, %v405
        %v471 = vadd.f32 %v343, %v409
        %v472 = vadd.f32 %v344, %v409
        %v473 = vadd.f32 %v345, %v409
        %v474 = vadd.f32 %v346, %v409
        %v475 = vadd.f32 %v347, %v413
        %v476 = vadd.f32 %v348, %v413
        %v477 = vadd.f32 %v349, %v413
        %v478 = vadd.f32 %v350, %v413
        %v479 = vadd.f32 %v351, %v417
        %v480 = vadd.f32 %v352, %v417
        %v481 = vadd.f32 %v353, %v417
        %v482 = vadd.f32 %v354, %v417
        %v483 = vadd.f32 %v355, %v421
        %v484 = vadd.f32 %v356, %v421
        %v485 = vadd.f32 %v357, %v421
        %v486 = vadd.f32 %v358, %v421
        %v487 = vadd.f32 %v359, %v425
        %v488 = vadd.f32 %v360, %v425
        %v489 = vadd.f32 %v361, %v425
        %v490 = vadd.f32 %v362, %v425
        %v491 = vadd.f32 %v363, %v429
        %v492 = vadd.f32 %v364, %v429
        %v493 = vadd.f32 %v365, %v429
        %v494 = vadd.f32 %v366, %v429
        %v495 = vadd.f32 %v367, %v433
        %v496 = vadd.f32 %v368, %v433
        %v497 = vadd.f32 %v369, %v433
        %v498 = vadd.f32 %v370, %v433
        %v499 = vadd.f32 %v371, %v437
        %v500 = vadd.f32 %v372, %v437
        %v501 = vadd.f32 %v373, %v437
        %v502 = vadd.f32 %v374, %v437
        %v503 = vadd.f32 %v375, %v441
        %v504 = vadd.f32 %v376, %v441
        %v505 = vadd.f32 %v377, %v441
        %v506 = vadd.f32 %v378, %v441
        %v507 = vadd.f32 %v379, %v445
        %v508 = vadd.f32 %v380, %v445
        %v509 = vadd.f32 %v381, %v445
        %v510 = vadd.f32 %v382, %v445
        %v511 = vadd.f32 %v383, %v449
        %v512 = vadd.f32 %v384, %v449
        %v513 = vadd.f32 %v385, %v449
        %v514 = vadd.f32 %v386, %v449
        %v515 = vadd.f32 %v387, %v453
        %v516 = vadd.f32 %v388, %v453
        %v517 = vadd.f32 %v389, %v453
        %v518 = vadd.f32 %v390, %v453
        %v519 = vadd.f32 %v391, %v457
        %v520 = vadd.f32 %v392, %v457
        %v521 = vadd.f32 %v393, %v457
        %v522 = vadd.f32 %v394, %v457
        %v523 = vadd.f32 %v395, %v461
        %v524 = vadd.f32 %v396, %v461
        %v525 = vadd.f32 %v397, %v461
        %v526 = vadd.f32 %v398, %v461
        %v527 = vadd.f32 %v399, %v465
        %v528 = vadd.f32 %v400, %v465
        %v529 = vadd.f32 %v401, %v465
        %v530 = vadd.f32 %v402, %v465
        %v531 = vtanh.pop %v467
        %v532 = vtanh.pop %v468
        %v533 = vtanh.pop %v469
        %v534 = vtanh.pop %v470
        %v535 = vtanh.pop %v471
        %v536 = vtanh.pop %v472
        %v537 = vtanh.pop %v473
        %v538 = vtanh.pop %v474
        %v539 = vtanh.pop %v475
        %v540 = vtanh.pop %v476
        %v541 = vtanh.pop %v477
        %v542 = vtanh.pop %v478
        %v543 = vtanh.pop %v479
        %v544 = vtanh.pop %v480
        %v545 = vtanh.pop %v481
        %v546 = vtanh.pop %v482
        %v547 = vtanh.pop %v483
        %v548 = vtanh.pop %v484
        %v549 = vtanh.pop %v485
        %v550 = vtanh.pop %v486
        %v551 = vtanh.pop %v487
        %v552 = vtanh.pop %v488
        %v553 = vtanh.pop %v489
        %v554 = vtanh.pop %v490
        %v555 = vtanh.pop %v491
        %v556 = vtanh.pop %v492
        %v557 = vtanh.pop %v493
        %v558 = vtanh.pop %v494
        %v559 = vtanh.pop %v495
        %v560 = vtanh.pop %v496
        %v561 = vtanh.pop %v497
        %v562 = vtanh.pop %v498
        %v563 = vtanh.pop %v499
        %v564 = vtanh.pop %v500
        %v565 = vtanh.pop %v501
        %v566 = vtanh.pop %v502
        %v567 = vtanh.pop %v503
        %v568 = vtanh.pop %v504
        %v569 = vtanh.pop %v505
        %v570 = vtanh.pop %v506
        %v571 = vtanh.pop %v507
        %v572 = vtanh.pop %v508
        %v573 = vtanh.pop %v509
        %v574 = vtanh.pop %v510
        %v575 = vtanh.pop %v511
        %v576 = vtanh.pop %v512
        %v577 = vtanh.pop %v513
        %v578 = vtanh.pop %v514
        %v579 = vtanh.pop %v515
        %v580 = vtanh.pop %v516
        %v581 = vtanh.pop %v517
        %v582 = vtanh.pop %v518
        %v583 = vtanh.pop %v519
        %v584 = vtanh.pop %v520
        %v585 = vtanh.pop %v521
        %v586 = vtanh.pop %v522
        %v587 = vtanh.pop %v523
        %v588 = vtanh.pop %v524
        %v589 = vtanh.pop %v525
        %v590 = vtanh.pop %v526
        %v591 = vtanh.pop %v527
        %v592 = vtanh.pop %v528
        %v593 = vtanh.pop %v529
        %v594 = vtanh.pop %v530
        %v595 = vld [vmem:[%s2] sm:$0xff]
        %v596 = vld [vmem:[%s2 + $0x8] sm:$0xff]
        %v597 = vld [vmem:[%s2 + $0x10] sm:$0xff]
        %v598 = vld [vmem:[%s2 + $0x18] sm:$0xff]
        %v599 = vld [vmem:[%s2 + $0x20] sm:$0xff]
        %v600 = vld [vmem:[%s2 + $0x28] sm:$0xff]
        %v601 = vld [vmem:[%s2 + $0x30] sm:$0xff]
        %v602 = vld [vmem:[%s2 + $0x38] sm:$0xff]
        %v603 = vld [vmem:[%s2 + $0x40] sm:$0xff]
        %v604 = vld [vmem:[%s2 + $0x48] sm:$0xff]
        %v605 = vld [vmem:[%s2 + $0x50] sm:$0xff]
        %v606 = vld [vmem:[%s2 + $0x58] sm:$0xff]
        %v607 = vld [vmem:[%s2 + $0x60] sm:$0xff]
        %v608 = vld [vmem:[%s2 + $0x68] sm:$0xff]
        %v609 = vld [vmem:[%s2 + $0x70] sm:$0xff]
        %v610 = vld [vmem:[%s2 + $0x78] sm:$0xff]
        %611 = vset.pattern.permute.xlu0 2
        %612 = vperm.xlu0 %611, %v222
        %v613 = vpop.permute.xlu0 %612
        %615 = vset.pattern.permute.xlu0 2
        %616 = vperm.xlu0 %615, %v223
        %v617 = vpop.permute.xlu0 %616
        %619 = vset.pattern.permute.xlu0 2
        %620 = vperm.xlu0 %619, %v224
        %v621 = vpop.permute.xlu0 %620
        %623 = vset.pattern.permute.xlu0 2
        %624 = vperm.xlu0 %623, %v225
        %v625 = vpop.permute.xlu0 %624
        %627 = vset.pattern.permute.xlu0 2
        %628 = vperm.xlu0 %627, %v226
        %v629 = vpop.permute.xlu0 %628
        %631 = vset.pattern.permute.xlu0 2
        %632 = vperm.xlu0 %631, %v227
        %v633 = vpop.permute.xlu0 %632
        %635 = vset.pattern.permute.xlu0 2
        %636 = vperm.xlu0 %635, %v228
        %v637 = vpop.permute.xlu0 %636
        %639 = vset.pattern.permute.xlu0 2
        %640 = vperm.xlu0 %639, %v229
        %v641 = vpop.permute.xlu0 %640
        %643 = vset.pattern.permute.xlu0 2
        %644 = vperm.xlu0 %643, %v230
        %v645 = vpop.permute.xlu0 %644
        %647 = vset.pattern.permute.xlu0 2
        %648 = vperm.xlu0 %647, %v231
        %v649 = vpop.permute.xlu0 %648
        %651 = vset.pattern.permute.xlu0 2
        %652 = vperm.xlu0 %651, %v232
        %v653 = vpop.permute.xlu0 %652
        %655 = vset.pattern.permute.xlu0 2
        %656 = vperm.xlu0 %655, %v233
        %v657 = vpop.permute.xlu0 %656
        %659 = vset.pattern.permute.xlu0 2
        %660 = vperm.xlu0 %659, %v234
        %v661 = vpop.permute.xlu0 %660
        %663 = vset.pattern.permute.xlu0 2
        %664 = vperm.xlu0 %663, %v235
        %v665 = vpop.permute.xlu0 %664
        %667 = vset.pattern.permute.xlu0 2
        %668 = vperm.xlu0 %667, %v236
        %v669 = vpop.permute.xlu0 %668
        %671 = vset.pattern.permute.xlu0 2
        %672 = vperm.xlu0 %671, %v237
        %v673 = vpop.permute.xlu0 %672
        %675 = vmatprep.subr.mxu0 %v532
        %676 = vmatpush1.msra.mxu0 %v531
        %677 = vmatprep.subr.mxu0 %v536
        %678 = vmatpush1.msra.mxu0 %v535
        %679 = vmatprep.subr.mxu0 %v540
        %680 = vmatpush1.msra.mxu0 %v539
        %681 = vmatprep.subr.mxu0 %v544
        %682 = vmatpush1.msra.mxu0 %v543
        %683 = vmatprep.subr.mxu0 %v548
        %684 = vmatpush1.msra.mxu0 %v547
        %685 = vmatprep.subr.mxu0 %v552
        %686 = vmatpush1.msra.mxu0 %v551
        %687 = vmatprep.subr.mxu0 %v556
        %688 = vmatpush1.msra.mxu0 %v555
        %689 = vmatprep.subr.mxu0 %v560
        %690 = vmatpush1.msra.mxu0 %v559
        %691 = vmatprep.subr.mxu0 %v564
        %692 = vmatpush1.msra.mxu0 %v563
        %693 = vmatprep.subr.mxu0 %v568
        %694 = vmatpush1.msra.mxu0 %v567
        %695 = vmatprep.subr.mxu0 %v572
        %696 = vmatpush1.msra.mxu0 %v571
        %697 = vmatprep.subr.mxu0 %v576
        %698 = vmatpush1.msra.mxu0 %v575
        %699 = vmatprep.subr.mxu0 %v580
        %700 = vmatpush1.msra.mxu0 %v579
        %701 = vmatprep.subr.mxu0 %v584
        %702 = vmatpush1.msra.mxu0 %v583
        %703 = vmatprep.subr.mxu0 %v588
        %704 = vmatpush1.msra.mxu0 %v587
        %705 = vmatprep.subr.mxu0 %v592
        %706 = vmatpush1.msra.mxu0 %v591
        %707 = vmatprep.subr.mxu0 0.0
        %708 = vmatpush1.msra.mxu0 0.0
        %709 = vmatprep.subr.mxu0 0.0
        %710 = vmatpush1.msra.mxu0 0.0
        %711 = vmatprep.subr.mxu0 0.0
        %712 = vmatpush1.msra.mxu0 0.0
        %713 = vmatprep.subr.mxu0 0.0
        %714 = vmatpush1.msra.mxu0 0.0
        %715 = vmatprep.subr.mxu0 0.0
        %716 = vmatpush1.msra.mxu0 0.0
        %717 = vmatprep.subr.mxu0 0.0
        %718 = vmatpush1.msra.mxu0 0.0
        %719 = vmatprep.subr.mxu0 0.0
        %720 = vmatpush1.msra.mxu0 0.0
        %721 = vmatprep.subr.mxu0 0.0
        %722 = vmatpush1.msra.mxu0 0.0
        %723 = vmatprep.subr.mxu0 0.0
        %724 = vmatpush1.msra.mxu0 0.0
        %725 = vmatprep.subr.mxu0 0.0
        %726 = vmatpush1.msra.mxu0 0.0
        %727 = vmatprep.subr.mxu0 0.0
        %728 = vmatpush1.msra.mxu0 0.0
        %729 = vmatprep.subr.mxu0 0.0
        %730 = vmatpush1.msra.mxu0 0.0
        %731 = vmatprep.subr.mxu0 0.0
        %732 = vmatpush1.msra.mxu0 0.0
        %733 = vmatprep.subr.mxu0 0.0
        %734 = vmatpush1.msra.mxu0 0.0
        %735 = vmatprep.subr.mxu0 0.0
        %736 = vmatpush1.msra.mxu0 0.0
        %737 = vmatprep.subr.mxu0 0.0
        %738 = vmatpush1.msra.mxu0 0.0
        %739 = vmatprep.mubr.f32.mxu0 0.0
        %740 = vmatmul.mubr.f32.gmra.mrb[0].mxu0 %v595
        %v741 = vpop.f32.mrb[0].mxu0
        %v742 = vadd.f32 %v613, %v741
        %v743 = vpop.f32.mrb[0].mxu0
        %v744 = vadd.f32 %v613, %v743
        %745 = vmatprep.mubr.f32.mxu0 0.0
        %746 = vmatmul.mubr.f32.gmra.mrb[0].mxu0 %v596
        %v747 = vpop.f32.mrb[0].mxu0
        %v748 = vadd.f32 %v617, %v747
        %v749 = vpop.f32.mrb[0].mxu0
        %v750 = vadd.f32 %v617, %v749
        %751 = vmatprep.mubr.f32.mxu0 0.0
        %752 = vmatmul.mubr.f32.gmra.mrb[0].mxu0 %v597
        %v753 = vpop.f32.mrb[0].mxu0
        %v754 = vadd.f32 %v621, %v753
        %v755 = vpop.f32.mrb[0].mxu0
        %v756 = vadd.f32 %v621, %v755
        %757 = vmatprep.mubr.f32.mxu0 0.0
        %758 = vmatmul.mubr.f32.gmra.mrb[0].mxu0 %v598
        %v759 = vpop.f32.mrb[0].mxu0
        %v760 = vadd.f32 %v625, %v759
        %v761 = vpop.f32.mrb[0].mxu0
        %v762 = vadd.f32 %v625, %v761
        %763 = vmatprep.mubr.f32.mxu0 0.0
        %764 = vmatmul.mubr.f32.gmra.mrb[0].mxu0 %v599
        %v765 = vpop.f32.mrb[0].mxu0
        %v766 = vadd.f32 %v629, %v765
        %v767 = vpop.f32.mrb[0].mxu0
        %v768 = vadd.f32 %v629, %v767
        %769 = vmatprep.mubr.f32.mxu0 0.0
        %770 = vmatmul.mubr.f32.gmra.mrb[0].mxu0 %v600
        %v771 = vpop.f32.mrb[0].mxu0
        %v772 = vadd.f32 %v633, %v771
        %v773 = vpop.f32.mrb[0].mxu0
        %v774 = vadd.f32 %v633, %v773
        %775 = vmatprep.mubr.f32.mxu0 0.0
        %776 = vmatmul.mubr.f32.gmra.mrb[0].mxu0 %v601
        %v777 = vpop.f32.mrb[0].mxu0
        %v778 = vadd.f32 %v637, %v777
        %v779 = vpop.f32.mrb[0].mxu0
        %v780 = vadd.f32 %v637, %v779
        %781 = vmatprep.mubr.f32.mxu0 0.0
        %782 = vmatmul.mubr.f32.gmra.mrb[0].mxu0 %v602
        %v783 = vpop.f32.mrb[0].mxu0
        %v784 = vadd.f32 %v641, %v783
        %v785 = vpop.f32.mrb[0].mxu0
        %v786 = vadd.f32 %v641, %v785
        %787 = vmatprep.mubr.f32.mxu0 0.0
        %788 = vmatmul.mubr.f32.gmra.mrb[0].mxu0 %v603
        %v789 = vpop.f32.mrb[0].mxu0
        %v790 = vadd.f32 %v645, %v789
        %v791 = vpop.f32.mrb[0].mxu0
        %v792 = vadd.f32 %v645, %v791
        %793 = vmatprep.mubr.f32.mxu0 0.0
        %794 = vmatmul.mubr.f32.gmra.mrb[0].mxu0 %v604
        %v795 = vpop.f32.mrb[0].mxu0
        %v796 = vadd.f32 %v649, %v795
        %v797 = vpop.f32.mrb[0].mxu0
        %v798 = vadd.f32 %v649, %v797
        %799 = vmatprep.mubr.f32.mxu0 0.0
        %800 = vmatmul.mubr.f32.gmra.mrb[0].mxu0 %v605
        %v801 = vpop.f32.mrb[0].mxu0
        %v802 = vadd.f32 %v653, %v801
        %v803 = vpop.f32.mrb[0].mxu0
        %v804 = vadd.f32 %v653, %v803
        %805 = vmatprep.mubr.f32.mxu0 0.0
        %806 = vmatmul.mubr.f32.gmra.mrb[0].mxu0 %v606
        %v807 = vpop.f32.mrb[0].mxu0
        %v808 = vadd.f32 %v657, %v807
        %v809 = vpop.f32.mrb[0].mxu0
        %v810 = vadd.f32 %v657, %v809
        %811 = vmatprep.mubr.f32.mxu0 0.0
        %812 = vmatmul.mubr.f32.gmra.mrb[0].mxu0 %v607
        %v813 = vpop.f32.mrb[0].mxu0
        %v814 = vadd.f32 %v661, %v813
        %v815 = vpop.f32.mrb[0].mxu0
        %v816 = vadd.f32 %v661, %v815
        %817 = vmatprep.mubr.f32.mxu0 0.0
        %818 = vmatmul.mubr.f32.gmra.mrb[0].mxu0 %v608
        %v819 = vpop.f32.mrb[0].mxu0
        %v820 = vadd.f32 %v665, %v819
        %v821 = vpop.f32.mrb[0].mxu0
        %v822 = vadd.f32 %v665, %v821
        %823 = vmatprep.mubr.f32.mxu0 0.0
        %824 = vmatmul.mubr.f32.gmra.mrb[0].mxu0 %v609
        %v825 = vpop.f32.mrb[0].mxu0
        %v826 = vadd.f32 %v669, %v825
        %v827 = vpop.f32.mrb[0].mxu0
        %v828 = vadd.f32 %v669, %v827
        %829 = vmatprep.mubr.f32.mxu0 0.0
        %830 = vmatmul.mubr.f32.gmra.mrb[0].mxu0 %v610
        %v831 = vpop.f32.mrb[0].mxu0
        %v832 = vadd.f32 %v673, %v831
        %v833 = vpop.f32.mrb[0].mxu0
        %v834 = vadd.f32 %v673, %v833
        %835 = vdwg.mxu0
        %836 = vmatprep.subr.mxu0 %v534
        %837 = vmatpush1.msra.mxu0 %v533
        %838 = vmatprep.subr.mxu0 %v538
        %839 = vmatpush1.msra.mxu0 %v537
        %840 = vmatprep.subr.mxu0 %v542
        %841 = vmatpush1.msra.mxu0 %v541
        %842 = vmatprep.subr.mxu0 %v546
        %843 = vmatpush1.msra.mxu0 %v545
        %844 = vmatprep.subr.mxu0 %v550
        %845 = vmatpush1.msra.mxu0 %v549
        %846 = vmatprep.subr.mxu0 %v554
        %847 = vmatpush1.msra.mxu0 %v553
        %848 = vmatprep.subr.mxu0 %v558
        %849 = vmatpush1.msra.mxu0 %v557
        %850 = vmatprep.subr.mxu0 %v562
        %851 = vmatpush1.msra.mxu0 %v561
        %852 = vmatprep.subr.mxu0 %v566
        %853 = vmatpush1.msra.mxu0 %v565
        %854 = vmatprep.subr.mxu0 %v570
        %855 = vmatpush1.msra.mxu0 %v569
        %856 = vmatprep.subr.mxu0 %v574
        %857 = vmatpush1.msra.mxu0 %v573
        %858 = vmatprep.subr.mxu0 %v578
        %859 = vmatpush1.msra.mxu0 %v577
        %860 = vmatprep.subr.mxu0 %v582
        %861 = vmatpush1.msra.mxu0 %v581
        %862 = vmatprep.subr.mxu0 %v586
        %863 = vmatpush1.msra.mxu0 %v585
        %864 = vmatprep.subr.mxu0 %v590
        %865 = vmatpush1.msra.mxu0 %v589
        %866 = vmatprep.subr.mxu0 %v594
        %867 = vmatpush1.msra.mxu0 %v593
        %868 = vmatprep.subr.mxu0 0.0
        %869 = vmatpush1.msra.mxu0 0.0
        %870 = vmatprep.subr.mxu0 0.0
        %871 = vmatpush1.msra.mxu0 0.0
        %872 = vmatprep.subr.mxu0 0.0
        %873 = vmatpush1.msra.mxu0 0.0
        %874 = vmatprep.subr.mxu0 0.0
        %875 = vmatpush1.msra.mxu0 0.0
        %876 = vmatprep.subr.mxu0 0.0
        %877 = vmatpush1.msra.mxu0 0.0
        %878 = vmatprep.subr.mxu0 0.0
        %879 = vmatpush1.msra.mxu0 0.0
        %880 = vmatprep.subr.mxu0 0.0
        %881 = vmatpush1.msra.mxu0 0.0
        %882 = vmatprep.subr.mxu0 0.0
        %883 = vmatpush1.msra.mxu0 0.0
        %884 = vmatprep.subr.mxu0 0.0
        %885 = vmatpush1.msra.mxu0 0.0
        %886 = vmatprep.subr.mxu0 0.0
        %887 = vmatpush1.msra.mxu0 0.0
        %888 = vmatprep.subr.mxu0 0.0
        %889 = vmatpush1.msra.mxu0 0.0
        %890 = vmatprep.subr.mxu0 0.0
        %891 = vmatpush1.msra.mxu0 0.0
        %892 = vmatprep.subr.mxu0 0.0
        %893 = vmatpush1.msra.mxu0 0.0
        %894 = vmatprep.subr.mxu0 0.0
        %895 = vmatpush1.msra.mxu0 0.0
        %896 = vmatprep.subr.mxu0 0.0
        %897 = vmatpush1.msra.mxu0 0.0
        %898 = vmatprep.subr.mxu0 0.0
        %899 = vmatpush1.msra.mxu0 0.0
        %900 = vmatprep.mubr.f32.mxu0 0.0
        %901 = vmatmul.mubr.f32.gmra.mrb[0].mxu0 %v595
        %v902 = vpop.f32.mrb[0].mxu0
        %v903 = vadd.f32 %v613, %v902
        %v904 = vpop.f32.mrb[0].mxu0
        %v905 = vadd.f32 %v613, %v904
        %906 = vmatprep.mubr.f32.mxu0 0.0
        %907 = vmatmul.mubr.f32.gmra.mrb[0].mxu0 %v596
        %v908 = vpop.f32.mrb[0].mxu0
        %v909 = vadd.f32 %v617, %v908
        %v910 = vpop.f32.mrb[0].mxu0
        %v911 = vadd.f32 %v617, %v910
        %912 = vmatprep.mubr.f32.mxu0 0.0
        %913 = vmatmul.mubr.f32.gmra.mrb[0].mxu0 %v597
        %v914 = vpop.f32.mrb[0].mxu0
        %v915 = vadd.f32 %v621, %v914
        %v916 = vpop.f32.mrb[0].mxu0
        %v917 = vadd.f32 %v621, %v916
        %918 = vmatprep.mubr.f32.mxu0 0.0
        %919 = vmatmul.mubr.f32.gmra.mrb[0].mxu0 %v598
        %v920 = vpop.f32.mrb[0].mxu0
        %v921 = vadd.f32 %v625, %v920
        %v922 = vpop.f32.mrb[0].mxu0
        %v923 = vadd.f32 %v625, %v922
        %924 = vmatprep.mubr.f32.mxu0 0.0
        %925 = vmatmul.mubr.f32.gmra.mrb[0].mxu0 %v599
        %v926 = vpop.f32.mrb[0].mxu0
        %v927 = vadd.f32 %v629, %v926
        %v928 = vpop.f32.mrb[0].mxu0
        %v929 = vadd.f32 %v629, %v928
        %930 = vmatprep.mubr.f32.mxu0 0.0
        %931 = vmatmul.mubr.f32.gmra.mrb[0].mxu0 %v600
        %v932 = vpop.f32.mrb[0].mxu0
        %v933 = vadd.f32 %v633, %v932
        %v934 = vpop.f32.mrb[0].mxu0
        %v935 = vadd.f32 %v633, %v934
        %936 = vmatprep.mubr.f32.mxu0 0.0
        %937 = vmatmul.mubr.f32.gmra.mrb[0].mxu0 %v601
        %v938 = vpop.f32.mrb[0].mxu0
        %v939 = vadd.f32 %v637, %v938
        %v940 = vpop.f32.mrb[0].mxu0
        %v941 = vadd.f32 %v637, %v940
        %942 = vmatprep.mubr.f32.mxu0 0.0
        %943 = vmatmul.mubr.f32.gmra.mrb[0].mxu0 %v602
        %v944 = vpop.f32.mrb[0].mxu0
        %v945 = vadd.f32 %v641, %v944
        %v946 = vpop.f32.mrb[0].mxu0
        %v947 = vadd.f32 %v641, %v946
        %948 = vmatprep.mubr.f32.mxu0 0.0
        %949 = vmatmul.mubr.f32.gmra.mrb[0].mxu0 %v603
        %v950 = vpop.f32.mrb[0].mxu0
        %v951 = vadd.f32 %v645, %v950
        %v952 = vpop.f32.mrb[0].mxu0
        %v953 = vadd.f32 %v645, %v952
        %954 = vmatprep.mubr.f32.mxu0 0.0
        %955 = vmatmul.mubr.f32.gmra.mrb[0].mxu0 %v604
        %v956 = vpop.f32.mrb[0].mxu0
        %v957 = vadd.f32 %v649, %v956
        %v958 = vpop.f32.mrb[0].mxu0
        %v959 = vadd.f32 %v649, %v958
        %960 = vmatprep.mubr.f32.mxu0 0.0
        %961 = vmatmul.mubr.f32.gmra.mrb[0].mxu0 %v605
        %v962 = vpop.f32.mrb[0].mxu0
        %v963 = vadd.f32 %v653, %v962
        %v964 = vpop.f32.mrb[0].mxu0
        %v965 = vadd.f32 %v653, %v964
        %966 = vmatprep.mubr.f32.mxu0 0.0
        %967 = vmatmul.mubr.f32.gmra.mrb[0].mxu0 %v606
        %v968 = vpop.f32.mrb[0].mxu0
        %v969 = vadd.f32 %v657, %v968
        %v970 = vpop.f32.mrb[0].mxu0
        %v971 = vadd.f32 %v657, %v970
        %972 = vmatprep.mubr.f32.mxu0 0.0
        %973 = vmatmul.mubr.f32.gmra.mrb[0].mxu0 %v607
        %v974 = vpop.f32.mrb[0].mxu0
        %v975 = vadd.f32 %v661, %v974
        %v976 = vpop.f32.mrb[0].mxu0
        %v977 = vadd.f32 %v661, %v976
        %978 = vmatprep.mubr.f32.mxu0 0.0
        %979 = vmatmul.mubr.f32.gmra.mrb[0].mxu0 %v608
        %v980 = vpop.f32.mrb[0].mxu0
        %v981 = vadd.f32 %v665, %v980
        %v982 = vpop.f32.mrb[0].mxu0
        %v983 = vadd.f32 %v665, %v982
        %984 = vmatprep.mubr.f32.mxu0 0.0
        %985 = vmatmul.mubr.f32.gmra.mrb[0].mxu0 %v609
        %v986 = vpop.f32.mrb[0].mxu0
        %v987 = vadd.f32 %v669, %v986
        %v988 = vpop.f32.mrb[0].mxu0
        %v989 = vadd.f32 %v669, %v988
        %990 = vmatprep.mubr.f32.mxu0 0.0
        %991 = vmatmul.mubr.f32.gmra.mrb[0].mxu0 %v610
        %v992 = vpop.f32.mrb[0].mxu0
        %v993 = vadd.f32 %v673, %v992
        %v994 = vpop.f32.mrb[0].mxu0
        %v995 = vadd.f32 %v673, %v994
        %996 = vdwg.mxu0
        %v997 = vtanh.pop %v742
        %v998 = vtanh.pop %v744
        %v999 = vtanh.pop %v903
        %v1000 = vtanh.pop %v905
        %v1001 = vtanh.pop %v748
        %v1002 = vtanh.pop %v750
        %v1003 = vtanh.pop %v909
        %v1004 = vtanh.pop %v911
        %v1005 = vtanh.pop %v754
        %v1006 = vtanh.pop %v756
        %v1007 = vtanh.pop %v915
        %v1008 = vtanh.pop %v917
        %v1009 = vtanh.pop %v760
        %v1010 = vtanh.pop %v762
        %v1011 = vtanh.pop %v921
        %v1012 = vtanh.pop %v923
        %v1013 = vtanh.pop %v766
        %v1014 = vtanh.pop %v768
        %v1015 = vtanh.pop %v927
        %v1016 = vtanh.pop %v929
        %v1017 = vtanh.pop %v772
        %v1018 = vtanh.pop %v774
        %v1019 = vtanh.pop %v933
        %v1020 = vtanh.pop %v935
        %v1021 = vtanh.pop %v778
        %v1022 = vtanh.pop %v780
        %v1023 = vtanh.pop %v939
        %v1024 = vtanh.pop %v941
        %v1025 = vtanh.pop %v784
        %v1026 = vtanh.pop %v786
        %v1027 = vtanh.pop %v945
        %v1028 = vtanh.pop %v947
        %v1029 = vtanh.pop %v790
        %v1030 = vtanh.pop %v792
        %v1031 = vtanh.pop %v951
        %v1032 = vtanh.pop %v953
        %v1033 = vtanh.pop %v796
        %v1034 = vtanh.pop %v798
        %v1035 = vtanh.pop %v957
        %v1036 = vtanh.pop %v959
        %v1037 = vtanh.pop %v802
        %v1038 = vtanh.pop %v804
        %v1039 = vtanh.pop %v963
        %v1040 = vtanh.pop %v965
        %v1041 = vtanh.pop %v808
        %v1042 = vtanh.pop %v810
        %v1043 = vtanh.pop %v969
        %v1044 = vtanh.pop %v971
        %v1045 = vtanh.pop %v814
        %v1046 = vtanh.pop %v816
        %v1047 = vtanh.pop %v975
        %v1048 = vtanh.pop %v977
        %v1049 = vtanh.pop %v820
        %v1050 = vtanh.pop %v822
        %v1051 = vtanh.pop %v981
        %v1052 = vtanh.pop %v983
        %v1053 = vtanh.pop %v826
        %v1054 = vtanh.pop %v828
        %v1055 = vtanh.pop %v987
        %v1056 = vtanh.pop %v989
        %v1057 = vtanh.pop %v832
        %v1058 = vtanh.pop %v834
        %v1059 = vtanh.pop %v993
        %v1060 = vtanh.pop %v995
        %v1061 = vld [vmem:[%s3] sm:$0x1]
        %s1062 = sld [smem:[#allocation2]]
        %v1063 = vstv %s1062
        %1064 = vmatprep.subr.mxu0 %v998
        %1065 = vmatpush1.msra.mxu0 %v997
        %1066 = vmatprep.subr.mxu0 %v1002
        %1067 = vmatpush1.msra.mxu0 %v1001
        %1068 = vmatprep.subr.mxu0 %v1006
        %1069 = vmatpush1.msra.mxu0 %v1005
        %1070 = vmatprep.subr.mxu0 %v1010
        %1071 = vmatpush1.msra.mxu0 %v1009
        %1072 = vmatprep.subr.mxu0 %v1014
        %1073 = vmatpush1.msra.mxu0 %v1013
        %1074 = vmatprep.subr.mxu0 %v1018
        %1075 = vmatpush1.msra.mxu0 %v1017
        %1076 = vmatprep.subr.mxu0 %v1022
        %1077 = vmatpush1.msra.mxu0 %v1021
        %1078 = vmatprep.subr.mxu0 %v1026
        %1079 = vmatpush1.msra.mxu0 %v1025
        %1080 = vmatprep.subr.mxu0 %v1030
        %1081 = vmatpush1.msra.mxu0 %v1029
        %1082 = vmatprep.subr.mxu0 %v1034
        %1083 = vmatpush1.msra.mxu0 %v1033
        %1084 = vmatprep.subr.mxu0 %v1038
        %1085 = vmatpush1.msra.mxu0 %v1037
        %1086 = vmatprep.subr.mxu0 %v1042
        %1087 = vmatpush1.msra.mxu0 %v1041
        %1088 = vmatprep.subr.mxu0 %v1046
        %1089 = vmatpush1.msra.mxu0 %v1045
        %1090 = vmatprep.subr.mxu0 %v1050
        %1091 = vmatpush1.msra.mxu0 %v1049
        %1092 = vmatprep.subr.mxu0 %v1054
        %1093 = vmatpush1.msra.mxu0 %v1053
        %1094 = vmatprep.subr.mxu0 %v1058
        %1095 = vmatpush1.msra.mxu0 %v1057
        %1096 = vmatprep.subr.mxu0 0.0
        %1097 = vmatpush1.msra.mxu0 0.0
        %1098 = vmatprep.subr.mxu0 0.0
        %1099 = vmatpush1.msra.mxu0 0.0
        %1100 = vmatprep.subr.mxu0 0.0
        %1101 = vmatpush1.msra.mxu0 0.0
        %1102 = vmatprep.subr.mxu0 0.0
        %1103 = vmatpush1.msra.mxu0 0.0
        %1104 = vmatprep.subr.mxu0 0.0
        %1105 = vmatpush1.msra.mxu0 0.0
        %1106 = vmatprep.subr.mxu0 0.0
        %1107 = vmatpush1.msra.mxu0 0.0
        %1108 = vmatprep.subr.mxu0 0.0
        %1109 = vmatpush1.msra.mxu0 0.0
        %1110 = vmatprep.subr.mxu0 0.0
        %1111 = vmatpush1.msra.mxu0 0.0
        %1112 = vmatprep.subr.mxu0 0.0
        %1113 = vmatpush1.msra.mxu0 0.0
        %1114 = vmatprep.subr.mxu0 0.0
        %1115 = vmatpush1.msra.mxu0 0.0
        %1116 = vmatprep.subr.mxu0 0.0
        %1117 = vmatpush1.msra.mxu0 0.0
        %1118 = vmatprep.subr.mxu0 0.0
        %1119 = vmatpush1.msra.mxu0 0.0
        %1120 = vmatprep.subr.mxu0 0.0
        %1121 = vmatpush1.msra.mxu0 0.0
        %1122 = vmatprep.subr.mxu0 0.0
        %1123 = vmatpush1.msra.mxu0 0.0
        %1124 = vmatprep.subr.mxu0 0.0
        %1125 = vmatpush1.msra.mxu0 0.0
        %1126 = vmatprep.subr.mxu0 0.0
        %1127 = vmatpush1.msra.mxu0 0.0
        %1128 = vmatprep.mubr.f32.mxu0 0.0
        %1129 = vmatmul.mubr.f32.gmra.mrb[0].mxu0 %v1061
        %v1130 = vpop.f32.mrb[0].mxu0
        %v1131 = vadd.f32 %v1063, %v1130
        %v1132 = vpop.f32.mrb[0].mxu0
        %v1133 = vadd.f32 %v1063, %v1132
        %1134 = vdwg.mxu0
        %1135 = vmatprep.subr.mxu0 %v1000
        %1136 = vmatpush1.msra.mxu0 %v999
        %1137 = vmatprep.subr.mxu0 %v1004
        %1138 = vmatpush1.msra.mxu0 %v1003
        %1139 = vmatprep.subr.mxu0 %v1008
        %1140 = vmatpush1.msra.mxu0 %v1007
        %1141 = vmatprep.subr.mxu0 %v1012
        %1142 = vmatpush1.msra.mxu0 %v1011
        %1143 = vmatprep.subr.mxu0 %v1016
        %1144 = vmatpush1.msra.mxu0 %v1015
        %1145 = vmatprep.subr.mxu0 %v1020
        %1146 = vmatpush1.msra.mxu0 %v1019
        %1147 = vmatprep.subr.mxu0 %v1024
        %1148 = vmatpush1.msra.mxu0 %v1023
        %1149 = vmatprep.subr.mxu0 %v1028
        %1150 = vmatpush1.msra.mxu0 %v1027
        %1151 = vmatprep.subr.mxu0 %v1032
        %1152 = vmatpush1.msra.mxu0 %v1031
        %1153 = vmatprep.subr.mxu0 %v1036
        %1154 = vmatpush1.msra.mxu0 %v1035
        %1155 = vmatprep.subr.mxu0 %v1040
        %1156 = vmatpush1.msra.mxu0 %v1039
        %1157 = vmatprep.subr.mxu0 %v1044
        %1158 = vmatpush1.msra.mxu0 %v1043
        %1159 = vmatprep.subr.mxu0 %v1048
        %1160 = vmatpush1.msra.mxu0 %v1047
        %1161 = vmatprep.subr.mxu0 %v1052
        %1162 = vmatpush1.msra.mxu0 %v1051
        %1163 = vmatprep.subr.mxu0 %v1056
        %1164 = vmatpush1.msra.mxu0 %v1055
        %1165 = vmatprep.subr.mxu0 %v1060
        %1166 = vmatpush1.msra.mxu0 %v1059
        %1167 = vmatprep.subr.mxu0 0.0
        %1168 = vmatpush1.msra.mxu0 0.0
        %1169 = vmatprep.subr.mxu0 0.0
        %1170 = vmatpush1.msra.mxu0 0.0
        %1171 = vmatprep.subr.mxu0 0.0
        %1172 = vmatpush1.msra.mxu0 0.0
        %1173 = vmatprep.subr.mxu0 0.0
        %1174 = vmatpush1.msra.mxu0 0.0
        %1175 = vmatprep.subr.mxu0 0.0
        %1176 = vmatpush1.msra.mxu0 0.0
        %1177 = vmatprep.subr.mxu0 0.0
        %1178 = vmatpush1.msra.mxu0 0.0
        %1179 = vmatprep.subr.mxu0 0.0
        %1180 = vmatpush1.msra.mxu0 0.0
        %1181 = vmatprep.subr.mxu0 0.0
        %1182 = vmatpush1.msra.mxu0 0.0
        %1183 = vmatprep.subr.mxu0 0.0
        %1184 = vmatpush1.msra.mxu0 0.0
        %1185 = vmatprep.subr.mxu0 0.0
        %1186 = vmatpush1.msra.mxu0 0.0
        %1187 = vmatprep.subr.mxu0 0.0
        %1188 = vmatpush1.msra.mxu0 0.0
        %1189 = vmatprep.subr.mxu0 0.0
        %1190 = vmatpush1.msra.mxu0 0.0
        %1191 = vmatprep.subr.mxu0 0.0
        %1192 = vmatpush1.msra.mxu0 0.0
        %1193 = vmatprep.subr.mxu0 0.0
        %1194 = vmatpush1.msra.mxu0 0.0
        %1195 = vmatprep.subr.mxu0 0.0
        %1196 = vmatpush1.msra.mxu0 0.0
        %1197 = vmatprep.subr.mxu0 0.0
        %1198 = vmatpush1.msra.mxu0 0.0
        %1199 = vmatprep.mubr.f32.mxu0 0.0
        %1200 = vmatmul.mubr.f32.gmra.mrb[0].mxu0 %v1061
        %v1201 = vpop.f32.mrb[0].mxu0
        %v1202 = vadd.f32 %v1063, %v1201
        %v1203 = vpop.f32.mrb[0].mxu0
        %v1204 = vadd.f32 %v1063, %v1203
        %1205 = vdwg.mxu0
        %v1210 = vcombine.low %v1131, %v1133
        %v1211 = vcombine.low %v1202, %v1204
        %v1213 = vunpack.c.l.s4 1966171168
        %v1214 = vunpack.c.0.s8 %v1213
        %v1215 = vlaneseq
        %v1216 = vshrl.u32 %v1215, 7
        %v1217 = vsub.s32 %v1214, %v1216
        %v1218 = vrot.slane %v1210, %v1217
        %v1220 = vunpack.c.l.s4 1966171168
        %v1221 = vunpack.c.0.s8 %v1220
        %v1222 = vlaneseq
        %v1223 = vshrl.u32 %v1222, 7
        %v1224 = vsub.s32 %v1221, %v1223
        %v1225 = vrot.slane %v1211, %v1224
        %v1226 = vcombine.low %v1218, %v1225
        %v1228 = vunpack.c.l.s4 1966171168
        %v1229 = vunpack.c.0.s8 %v1228
        %v1230 = vlaneseq
        %v1231 = vshrl.u32 %v1230, 7
        %v1232 = vsub.s32 %v1229, %v1231
        %v1233 = vrot.slane %v1226, %v1232
        %v1235 = vlaneseq
        %vm1236 = vcmp.ge.s32.totalorder %v1235, 0
        %vm1237 = vcmp.lt.s32.totalorder %v1235, 512
        %vm1238 = vmand %vm1236, %vm1237
        %1239 = vst.msk [vmem:[%s216] sm:$0xf] %vm1238, %v1233
        %s1240 = sand.u32 %s138, 1
        %s1241 = scalar_lea.sflag [#allocation4], %s1240
        %s1242 = sand.u32 %s138, 1
        %s1243 = smul.addr %s1242, 4
        %s1244 = scalar_lea.vmem [#allocation3], %s1243
        // Predicated region
        $region41: #{pinn_forward.1} parent=39 // pred_check
          %p1245 = pneg %p148
        $region42: #{pinn_forward.1} parent=39 // pred_check_branch
          %1247 = sbr.rel (%p1245) target = $region44
        $region43: #{pinn_forward.1} parent=39 // pred_region
          %s1249 = ssub.s32 64, 64
          %1250 = vsyncadd %s1241, %s1249
          %s1251 = smul.addr %s20, 4
          %s1252 = smul.addr %s1251, 16
          %s1253 = scalar_lea.hbm %s5, %s1252
          %s1255 = sshll.u32 %s1244, 4
          %s1256 = int_to_ptr.vmem [resolvable:$true] %s1255
          %1258 = dma.vmem_to_hbm [thread:$0]  %s1256, 64, %s1253, %s1241
        $region44: #{pinn_forward.1} parent=39 // pred_fallthru
          _
      $region40: #{pinn_forward.1} parent=5 // pred_fallthru
        _
      %p1259 = scmp.le.s32.totalorder 2, %s15
      // Predicated region
      $region45: #{pinn_forward.1} parent=5 // pred_check
        %p1260 = pneg %p1259
      $region46: #{pinn_forward.1} parent=5 // pred_check_branch
        %1262 = sbr.rel (%p1260) target = $region48
      $region47: #{pinn_forward.1} parent=5 // pred_region
        %s1263 = ssub.s32 %s15, 2
        // Predicated region
        $region49: #{pinn_forward.1} parent=47 // pred_check
          %p1264 = pneg %p154
        $region50: #{pinn_forward.1} parent=47 // pred_check_branch
          %1266 = sbr.rel (%p1264) target = $region52
        $region51: #{pinn_forward.1} parent=47 // pred_region
          %s1267 = sand.u32 %s139, 1
          %s1268 = scalar_lea.sflag [#allocation4], %s1267
          %s1269 = sand.u32 %s139, 1
          %s1270 = smul.addr %s1269, 4
          %s1271 = scalar_lea.vmem [#allocation3], %s1270
          %1272 = dma.done %s1268, 64
        $region52: #{pinn_forward.1} parent=47 // pred_fallthru
          _
      $region48: #{pinn_forward.1} parent=5 // pred_fallthru
        _
    $region6: #{pinn_forward.1} parent=1 // loop_footer
      %s19 = sadd.s32 1, %s15
    $region7: #{pinn_forward.1} parent=1 // loop_footer_branch
      %14 = sbr.rel target = $region3
    $region8: #{pinn_forward.1} parent=1 // loop_exit
      _
    %1273 = vsyncpa [#allocation4], 1
    %s1274 = scalar_lea.sflag [#allocation4], 1
    %1275 = vsyncpa %s1274, 1

</llo_original>
